<compile_context>
chip_gen: v7x
topology: tpu7x:2x2x1
jax: 0.10.0
libtpu: 0.0.40
codegen_flags: <defaults>
</compile_context>

<pallas_src>
import jax
import jax.numpy as jnp
from jax.experimental import pallas as pl
from jax.experimental.pallas import tpu as pltpu


def _make_attention_kernel(nb, x_dtype):
    """Build a kernel for blocks of `nb` batch elements of shape (C, ts)."""

    def kernel(x_ref, w_ref, b_ref, o_ref):
        # x_ref: (nb, C, ts)  -- spatial on lanes (lane-dense)
        # w_ref: (C, C)       -- fused  w2 @ w1, in x's dtype (bf16-fast MXU)
        # b_ref: (C, 1)       -- fused  w2 @ b1 + b2, f32
        # o_ref: (nb, C, ts)
        w = w_ref[...]
        b = b_ref[...]
        for i in range(nb):                                   # static, tiny
            x = x_ref[i]                                      # (C, ts)
            # Fused 1x1 convs: single MXU matmul, f32 accumulation.
            a = jnp.dot(w, x, preferred_element_type=jnp.float32) + b
            att = jax.nn.sigmoid(a)                           # EUP slot
            # Gate in the input dtype (no full-tile f32 upcast for bf16).
            o_ref[i] = (x * att.astype(x_dtype)).astype(o_ref.dtype)

    return kernel


def _chip_tuning():
    """(target_block_bytes, vmem_limit_bytes) per TPU generation."""
    try:
        vmem = pltpu.get_tpu_info().vmem_capacity_bytes
        if vmem >= (96 << 20):        # v5e / v6e: 128 MiB physical VMEM
            return 6 << 20, 80 << 20
        return 4 << 20, 48 << 20      # v7x: 64 MiB physical per TensorCore
    except Exception:
        return 2 << 20, 48 << 20      # conservative fallback (safe everywhere)


def _choose_tiling(n, c, s, itemsize, target_bytes):
    """Pick (nb, ts): batch-fold count and lane-aligned spatial tile."""
    row_bytes = c * itemsize
    ts = max((target_bytes // row_bytes) // 128 * 128, 128)
    if ts >= s:
        # Whole spatial extent fits in one tile: fold batch elements to
        # amortize the ~0.35 us per-grid-step overhead on tiny inputs, but
        # keep >= 4 grid steps when N allows (megacore load balance).
        ts = s
        max_fold = n if n < 4 else max(1, n // 4)
        nb = 1
        for d in range(1, max_fold + 1):
            if n % d == 0 and d * s * row_bytes <= target_bytes:
                nb = d
        return nb, ts
    # Large spatial: one batch element per block, big lane-aligned tile.
    # Guard against degenerate grids (keep a few steps for the 2 TCs on v7x).
    while ts > 256 and n * pl.cdiv(s, ts) < 4:
        ts = max((ts // 2) // 128 * 128, 128)
    return 1, ts


@jax.jit
def attention_module(x_nchw, w1, b1, w2, b2):
    """AttentionModule forward.

    x_nchw : (N, C, H, W)
    w1     : (C//8, C)   -- conv1.weight squeezed from (C//8, C, 1, 1)
    b1     : (C//8,)
    w2     : (C, C//8)   -- conv2.weight squeezed
    b2     : (C,)
    returns (N, C, H, W)
    """
    N, C, H, W = x_nchw.shape
    S = H * W

    # Free view (no data movement): NCHW -> (N, C, H*W).
    x = x_nchw.reshape(N, C, S)

    # Algebraic fusion of the two 1x1 convs (valid: no activation between
    # conv1 and conv2 in the reference module).  Tiny matrices -> do it in
    # f32 at highest precision in the wrapper, once.
    w_fused = jnp.dot(w2.astype(jnp.float32), w1.astype(jnp.float32),
                      precision=jax.lax.Precision.HIGHEST)        # (C, C)
    b_fused = (jnp.dot(w2.astype(jnp.float32), b1.astype(jnp.float32),
                       precision=jax.lax.Precision.HIGHEST)
               + b2.astype(jnp.float32)).reshape(C, 1)            # (C, 1)
    w_fused = w_fused.astype(x.dtype)     # bf16-fast MXU path for bf16 inputs

    target_bytes, vmem_limit = _chip_tuning()
    nb, ts = _choose_tiling(N, C, S, x.dtype.itemsize, target_bytes)
    grid = (N // nb, pl.cdiv(S, ts))

    # Memory-bound op (~2 flops/byte): advisory cost estimate for XLA.
    flops = 2 * N * S * C * C + 2 * N * S * C
    bytes_accessed = 2 * N * S * C * x.dtype.itemsize + (C * C + C) * 4
    cost = pl.CostEstimate(flops=flops, transcendentals=N * S * C,
                           bytes_accessed=bytes_accessed)

    kernel = _make_attention_kernel(nb, x.dtype)

    out = pl.pallas_call(
        kernel,
        out_shape=jax.ShapeDtypeStruct((N, C, S), x_nchw.dtype),
        grid_spec=pltpu.PrefetchScalarGridSpec(
            num_scalar_prefetch=0,
            grid=grid,
            in_specs=[
                pl.BlockSpec((nb, C, ts), lambda n, s: (n, 0, s)),  # x tile
                pl.BlockSpec((C, C), lambda n, s: (0, 0)),          # fused W
                pl.BlockSpec((C, 1), lambda n, s: (0, 0)),          # fused b
            ],
            out_specs=pl.BlockSpec((nb, C, ts), lambda n, s: (n, 0, s)),
        ),
        compiler_params=pltpu.CompilerParams(
            dimension_semantics=("parallel", "parallel"),
            vmem_limit_bytes=int(vmem_limit)),
        cost_estimate=cost,
    )(x, w_fused, b_fused)

    return out.reshape(N, C, H, W)


def _reference(x, w1, b1, w2, b2):
    # Pure-JAX reference of the PyTorch forward (1x1 convs as einsums).
    a = jnp.einsum("nchw,oc->nohw", x, w1) + b1[None, :, None, None]
    a = jnp.einsum("nohw,co->nchw", a, w2) + b2[None, :, None, None]
    return x * jax.nn.sigmoid(a)


if __name__ == "__main__":
    key = jax.random.PRNGKey(0)
    k_x, k_w1, k_b1, k_w2, k_b2 = jax.random.split(key, 5)

    N, C, H, W = 2, 32, 16, 16          # in_channels=32 -> hidden = 32 // 8 = 4
    Cr = C // 8

    x = jax.random.normal(k_x, (N, C, H, W), dtype=jnp.float32)
    # Deterministic "conv" parameters (kernel_size=1 -> spatial dims squeezed).
    w1 = jax.random.normal(k_w1, (Cr, C), dtype=jnp.float32) * 0.1
    b1 = jax.random.normal(k_b1, (Cr,), dtype=jnp.float32) * 0.1
    w2 = jax.random.normal(k_w2, (C, Cr), dtype=jnp.float32) * 0.1
    b2 = jax.random.normal(k_b2, (C,), dtype=jnp.float32) * 0.1

    out = attention_module(x, w1, b1, w2, b2)
    out = jax.block_until_ready(out)

    ref = _reference(x, w1, b1, w2, b2)
    assert out.shape == (N, C, H, W)
    # Fusion (w2 @ w1) changes rounding order slightly vs. the two-stage
    # reference; 1e-4 is far above the expected ~2e-5 worst-case deviation.
    assert jnp.allclose(out, ref, atol=1e-4, rtol=1e-4), "mismatch vs reference"

    print("KERNEL_OK")
</pallas_src>

<mosaic_0001>
module attributes {stable_mosaic.version = 11 : i64} {
  func.func @kernel(%arg0: i32, %arg1: i32, %arg2: memref<2x32x256xf32, #tpu.memory_space<vmem>>, %arg3: memref<32x32xf32, #tpu.memory_space<vmem>>, %arg4: memref<32x1xf32, #tpu.memory_space<vmem>>, %arg5: memref<2x32x256xf32, #tpu.memory_space<vmem>>) attributes {dimension_semantics = [#tpu.dimension_semantics<parallel>, #tpu.dimension_semantics<parallel>], iteration_bounds = array<i64: 1, 1>, scalar_prefetch = 0 : i64, scratch_operands = 0 : i64, tpu.core_type = #tpu.core_type<tc>, window_params = [{transform_indices = @transform_0, window_bounds = array<i64: 2, 32, 256>}, {pipeline_mode = #tpu.pipeline_mode<synchronous>, transform_indices = @transform_1, window_bounds = array<i64: 32, 32>}, {pipeline_mode = #tpu.pipeline_mode<synchronous>, transform_indices = @transform_2, window_bounds = array<i64: 32, 1>}, {transform_indices = @transform_3, window_bounds = array<i64: 2, 32, 256>}]} {
    %c0 = arith.constant 0 : index
    %c0_0 = arith.constant 0 : index
    %0 = vector.load %arg3[%c0, %c0_0] : memref<32x32xf32, #tpu.memory_space<vmem>>, vector<32x32xf32>
    %c0_1 = arith.constant 0 : index
    %c0_2 = arith.constant 0 : index
    %1 = vector.load %arg4[%c0_1, %c0_2] : memref<32x1xf32, #tpu.memory_space<vmem>>, vector<32x1xf32>
    %c0_3 = arith.constant 0 : index
    %c0_4 = arith.constant 0 : index
    %c0_5 = arith.constant 0 : index
    %2 = vector.load %arg2[%c0_3, %c0_4, %c0_5] : memref<2x32x256xf32, #tpu.memory_space<vmem>>, vector<1x32x256xf32>
    %3 = vector.shape_cast %2 : vector<1x32x256xf32> to vector<32x256xf32>
    %cst = arith.constant dense<0.000000e+00> : vector<32x256xf32>
    %4 = tpu.matmul %0, %3, %cst {dimension_numbers = #tpu.dot_dimension_numbers<[1], [0], [0], [1], [0, 0, 1, 1], [], []>} : vector<32x32xf32>, vector<32x256xf32>, vector<32x256xf32> -> vector<32x256xf32>
    %5 = vector.broadcast %1 : vector<32x1xf32> to vector<32x256xf32>
    %6 = arith.addf %4, %5 : vector<32x256xf32>
    %7 = arith.negf %6 : vector<32x256xf32>
    %8 = math.exp %7 : vector<32x256xf32>
    %cst_6 = arith.constant 1.000000e+00 : f32
    %9 = vector.broadcast %cst_6 : f32 to vector<32x256xf32>
    %10 = arith.addf %9, %8 : vector<32x256xf32>
    %11 = arith.divf %9, %10 : vector<32x256xf32>
    %12 = arith.mulf %3, %11 : vector<32x256xf32>
    %c0_7 = arith.constant 0 : index
    %c0_8 = arith.constant 0 : index
    %c0_9 = arith.constant 0 : index
    %13 = vector.load %arg5[%c0_7, %c0_8, %c0_9] : memref<2x32x256xf32, #tpu.memory_space<vmem>>, vector<1x32x256xf32>
    %14 = vector.shape_cast %13 : vector<1x32x256xf32> to vector<32x256xf32>
    %15 = vector.shape_cast %12 : vector<32x256xf32> to vector<1x32x256xf32>
    tpu.vector_store %arg5[%c0_7, %c0_8, %c0_9], %15 {strides = array<i32>} : memref<2x32x256xf32, #tpu.memory_space<vmem>>, vector<1x32x256xf32>,
    %c1 = arith.constant 1 : index
    %c0_10 = arith.constant 0 : index
    %c0_11 = arith.constant 0 : index
    %16 = vector.load %arg2[%c1, %c0_10, %c0_11] : memref<2x32x256xf32, #tpu.memory_space<vmem>>, vector<1x32x256xf32>
    %17 = vector.shape_cast %16 : vector<1x32x256xf32> to vector<32x256xf32>
    %cst_12 = arith.constant dense<0.000000e+00> : vector<32x256xf32>
    %18 = tpu.matmul %0, %17, %cst_12 {dimension_numbers = #tpu.dot_dimension_numbers<[1], [0], [0], [1], [0, 0, 1, 1], [], []>} : vector<32x32xf32>, vector<32x256xf32>, vector<32x256xf32> -> vector<32x256xf32>
    %19 = vector.broadcast %1 : vector<32x1xf32> to vector<32x256xf32>
    %20 = arith.addf %18, %19 : vector<32x256xf32>
    %21 = arith.negf %20 : vector<32x256xf32>
    %22 = math.exp %21 : vector<32x256xf32>
    %cst_13 = arith.constant 1.000000e+00 : f32
    %23 = vector.broadcast %cst_13 : f32 to vector<32x256xf32>
    %24 = arith.addf %23, %22 : vector<32x256xf32>
    %25 = arith.divf %23, %24 : vector<32x256xf32>
    %26 = arith.mulf %17, %25 : vector<32x256xf32>
    %c1_14 = arith.constant 1 : index
    %c0_15 = arith.constant 0 : index
    %c0_16 = arith.constant 0 : index
    %27 = vector.load %arg5[%c1_14, %c0_15, %c0_16] : memref<2x32x256xf32, #tpu.memory_space<vmem>>, vector<1x32x256xf32>
    %28 = vector.shape_cast %27 : vector<1x32x256xf32> to vector<32x256xf32>
    %29 = vector.shape_cast %26 : vector<32x256xf32> to vector<1x32x256xf32>
    tpu.vector_store %arg5[%c1_14, %c0_15, %c0_16], %29 {strides = array<i32>} : memref<2x32x256xf32, #tpu.memory_space<vmem>>, vector<1x32x256xf32>,
    return
  }
  func.func @transform_0(%arg0: i32, %arg1: i32) -> (i32, i32, i32) {
    %c0_i32 = arith.constant 0 : i32
    %c0_i32_0 = arith.constant 0 : i32
    return %arg0, %c0_i32, %arg1 : i32, i32, i32
  }
  func.func @transform_1(%arg0: i32, %arg1: i32) -> (i32, i32) {
    %c0_i32 = arith.constant 0 : i32
    %c0_i32_0 = arith.constant 0 : i32
    %c0_i32_1 = arith.constant 0 : i32
    return %c0_i32, %c0_i32_0 : i32, i32
  }
  func.func @transform_2(%arg0: i32, %arg1: i32) -> (i32, i32) {
    %c0_i32 = arith.constant 0 : i32
    %c0_i32_0 = arith.constant 0 : i32
    %c0_i32_1 = arith.constant 0 : i32
    return %c0_i32, %c0_i32_0 : i32, i32
  }
  func.func @transform_3(%arg0: i32, %arg1: i32) -> (i32, i32, i32) {
    %c0_i32 = arith.constant 0 : i32
    %c0_i32_0 = arith.constant 0 : i32
    return %arg0, %c0_i32, %arg1 : i32, i32, i32
  }
}

</mosaic_0001>

<llo_original>
// kernel: attention_module.1
$region0: #{attention_module.1}
  #allocation0 [shape = 'u32[]', space=smem, size = 0x4, offset = 0x4, fixed_abs, tag = 'smem constant byte address 0x4 - core index']
  #allocation1 [shape = 'u32[144,128]{1,0:T(1,128)}', space=vmem, size = 0x12000, scoped, tag = 'internal scratch']
  %s0 = inlined_call_operand.vmem [shape: f32[2,32,256], index: 0, kind: input, shape index: {}]
  %s1 = inlined_call_operand.vmem [shape: f32[32,32], index: 1, kind: input, shape index: {}]
  %s2 = inlined_call_operand.vmem [shape: f32[32,1], index: 2, kind: input, shape index: {}]
  %s3 = inlined_call_operand.vmem [shape: f32[2,32,256], index: 3, kind: output, shape index: {}]
  %s4 = sld [smem:[#allocation0]]
  $region22: #{attention_module.1} parent=0
    _
  %s6 = ssub.s32 1, %s4
  %s7 = scalar_select 0, %s6, %s4
  // Predicated region
  $region2: #{attention_module.1} parent=0 // pred_check
    _
  $region3: #{attention_module.1} parent=0 // pred_check_branch
    %9 = sbr.rel (0) target = $region5
  $region4: #{attention_module.1} parent=0 // pred_region
    _
  $region5: #{attention_module.1} parent=0 // pred_fallthru
    _
  // Predicated region
  $region6: #{attention_module.1} parent=0 // pred_check
    _
  $region7: #{attention_module.1} parent=0 // pred_check_branch
    %11 = sbr.rel (0) target = $region9
  $region8: #{attention_module.1} parent=0 // pred_region
    _
  $region9: #{attention_module.1} parent=0 // pred_fallthru
    _
  // Predicated region
  $region10: #{attention_module.1} parent=0 // pred_check
    _
  $region11: #{attention_module.1} parent=0 // pred_check_branch
    %13 = sbr.rel (0) target = $region13
  $region12: #{attention_module.1} parent=0 // pred_region
    _
  $region13: #{attention_module.1} parent=0 // pred_fallthru
    _
  %v14 = vld [vmem:[%s1] sm:$0xff]
  %v15 = vld [vmem:[%s1 + $0x8] sm:$0xff]
  %v16 = vld [vmem:[%s1 + $0x10] sm:$0xff]
  %v17 = vld [vmem:[%s1 + $0x18] sm:$0xff]
  %v18 = vld [vmem:[%s2] sm:$0xff]
  %v19 = vld [vmem:[%s2 + $0x8] sm:$0xff]
  %v20 = vld [vmem:[%s2 + $0x10] sm:$0xff]
  %v21 = vld [vmem:[%s2 + $0x18] sm:$0xff]
  %v22 = vld [vmem:[%s0] sm:$0xff]
  %v23 = vld [vmem:[%s0 + $0x8] sm:$0xff]
  %v24 = vld [vmem:[%s0 + $0x10] sm:$0xff]
  %v25 = vld [vmem:[%s0 + $0x18] sm:$0xff]
  %v26 = vld [vmem:[%s0 + $0x20] sm:$0xff]
  %v27 = vld [vmem:[%s0 + $0x28] sm:$0xff]
  %v28 = vld [vmem:[%s0 + $0x30] sm:$0xff]
  %v29 = vld [vmem:[%s0 + $0x38] sm:$0xff]
  %31 = vset.pattern.permute.xlu0 0
  %32 = vperm.xlu0 %31, %v18
  %v33 = vpop.permute.xlu0 %32
  %36 = vset.pattern.permute.xlu0 0
  %37 = vperm.xlu0 %36, %v19
  %v38 = vpop.permute.xlu0 %37
  %41 = vset.pattern.permute.xlu0 0
  %42 = vperm.xlu0 %41, %v20
  %v43 = vpop.permute.xlu0 %42
  %46 = vset.pattern.permute.xlu0 0
  %47 = vperm.xlu0 %46, %v21
  %v48 = vpop.permute.xlu0 %47
  %vm50 = vcmask 261120
  %v52 = vsel %vm50, %v14, 0
  %v55 = vsel %vm50, %v15, 0
  %v58 = vsel %vm50, %v16, 0
  %v61 = vsel %vm50, %v17, 0
  %63 = vmatprep.subr.mxu0 %v23
  %64 = vmatpush1.msra.mxu0 %v22
  %65 = vmatprep.subr.mxu0 %v25
  %66 = vmatpush1.msra.mxu0 %v24
  %67 = vmatprep.subr.mxu0 %v27
  %68 = vmatpush1.msra.mxu0 %v26
  %69 = vmatprep.subr.mxu0 %v29
  %70 = vmatpush1.msra.mxu0 %v28
  %71 = vmatprep.subr.mxu0 0.0
  %72 = vmatpush1.msra.mxu0 0.0
  %73 = vmatprep.subr.mxu0 0.0
  %74 = vmatpush1.msra.mxu0 0.0
  %75 = vmatprep.subr.mxu0 0.0
  %76 = vmatpush1.msra.mxu0 0.0
  %77 = vmatprep.subr.mxu0 0.0
  %78 = vmatpush1.msra.mxu0 0.0
  %79 = vmatprep.subr.mxu0 0.0
  %80 = vmatpush1.msra.mxu0 0.0
  %81 = vmatprep.subr.mxu0 0.0
  %82 = vmatpush1.msra.mxu0 0.0
  %83 = vmatprep.subr.mxu0 0.0
  %84 = vmatpush1.msra.mxu0 0.0
  %85 = vmatprep.subr.mxu0 0.0
  %86 = vmatpush1.msra.mxu0 0.0
  %87 = vmatprep.subr.mxu0 0.0
  %88 = vmatpush1.msra.mxu0 0.0
  %89 = vmatprep.subr.mxu0 0.0
  %90 = vmatpush1.msra.mxu0 0.0
  %91 = vmatprep.subr.mxu0 0.0
  %92 = vmatpush1.msra.mxu0 0.0
  %93 = vmatprep.subr.mxu0 0.0
  %94 = vmatpush1.msra.mxu0 0.0
  %95 = vmatprep.subr.mxu0 0.0
  %96 = vmatpush1.msra.mxu0 0.0
  %97 = vmatprep.subr.mxu0 0.0
  %98 = vmatpush1.msra.mxu0 0.0
  %99 = vmatprep.subr.mxu0 0.0
  %100 = vmatpush1.msra.mxu0 0.0
  %101 = vmatprep.subr.mxu0 0.0
  %102 = vmatpush1.msra.mxu0 0.0
  %103 = vmatprep.subr.mxu0 0.0
  %104 = vmatpush1.msra.mxu0 0.0
  %105 = vmatprep.subr.mxu0 0.0
  %106 = vmatpush1.msra.mxu0 0.0
  %107 = vmatprep.subr.mxu0 0.0
  %108 = vmatpush1.msra.mxu0 0.0
  %109 = vmatprep.subr.mxu0 0.0
  %110 = vmatpush1.msra.mxu0 0.0
  %111 = vmatprep.subr.mxu0 0.0
  %112 = vmatpush1.msra.mxu0 0.0
  %113 = vmatprep.subr.mxu0 0.0
  %114 = vmatpush1.msra.mxu0 0.0
  %115 = vmatprep.subr.mxu0 0.0
  %116 = vmatpush1.msra.mxu0 0.0
  %117 = vmatprep.subr.mxu0 0.0
  %118 = vmatpush1.msra.mxu0 0.0
  %119 = vmatprep.subr.mxu0 0.0
  %120 = vmatpush1.msra.mxu0 0.0
  %121 = vmatprep.subr.mxu0 0.0
  %122 = vmatpush1.msra.mxu0 0.0
  %123 = vmatprep.subr.mxu0 0.0
  %124 = vmatpush1.msra.mxu0 0.0
  %125 = vmatprep.subr.mxu0 0.0
  %126 = vmatpush1.msra.mxu0 0.0
  %127 = vmatprep.mubr.f32.mxu0 0.0
  %128 = vmatmul.mubr.f32.gmra.mrb[0].mxu0 %v52
  %v129 = vpop.f32.mrb[0].mxu0
  %v130 = vadd.f32 %v33, %v129
  %v131 = vpop.f32.mrb[0].mxu0
  %v132 = vadd.f32 %v33, %v131
  %133 = vmatprep.mubr.f32.mxu0 0.0
  %134 = vmatmul.mubr.f32.gmra.mrb[0].mxu0 %v55
  %v135 = vpop.f32.mrb[0].mxu0
  %v136 = vadd.f32 %v38, %v135
  %v137 = vpop.f32.mrb[0].mxu0
  %v138 = vadd.f32 %v38, %v137
  %139 = vmatprep.mubr.f32.mxu0 0.0
  %140 = vmatmul.mubr.f32.gmra.mrb[0].mxu0 %v58
  %v141 = vpop.f32.mrb[0].mxu0
  %v142 = vadd.f32 %v43, %v141
  %v143 = vpop.f32.mrb[0].mxu0
  %v144 = vadd.f32 %v43, %v143
  %145 = vmatprep.mubr.f32.mxu0 0.0
  %146 = vmatmul.mubr.f32.gmra.mrb[0].mxu0 %v61
  %v147 = vpop.f32.mrb[0].mxu0
  %v148 = vadd.f32 %v48, %v147
  %v149 = vpop.f32.mrb[0].mxu0
  %v150 = vadd.f32 %v48, %v149
  %151 = vdwg.mxu0
  %v152 = vxor.u32 %v130, 2147483648
  %v153 = vxor.u32 %v132, 2147483648
  %v154 = vxor.u32 %v136, 2147483648
  %v155 = vxor.u32 %v138, 2147483648
  %v156 = vxor.u32 %v142, 2147483648
  %v157 = vxor.u32 %v144, 2147483648
  %v158 = vxor.u32 %v148, 2147483648
  %v159 = vxor.u32 %v150, 2147483648
  %v160 = vmul.f32 %v152, 1.442695
  %v161 = vpow.pop %v160
  %v162 = vmul.f32 %v153, 1.442695
  %v163 = vpow.pop %v162
  %v164 = vmul.f32 %v154, 1.442695
  %v165 = vpow.pop %v164
  %v166 = vmul.f32 %v155, 1.442695
  %v167 = vpow.pop %v166
  %v168 = vmul.f32 %v156, 1.442695
  %v169 = vpow.pop %v168
  %v170 = vmul.f32 %v157, 1.442695
  %v171 = vpow.pop %v170
  %v172 = vmul.f32 %v158, 1.442695
  %v173 = vpow.pop %v172
  %v174 = vmul.f32 %v159, 1.442695
  %v175 = vpow.pop %v174
  %v176 = vadd.f32 %v161, 1.0
  %v177 = vadd.f32 %v163, 1.0
  %v178 = vadd.f32 %v165, 1.0
  %v179 = vadd.f32 %v167, 1.0
  %v180 = vadd.f32 %v169, 1.0
  %v181 = vadd.f32 %v171, 1.0
  %v182 = vadd.f32 %v173, 1.0
  %v183 = vadd.f32 %v175, 1.0
  %v184 = vrcp.pop %v176
  %v185 = vmul.f32 1.0, %v184
  %v186 = vrcp.pop %v177
  %v187 = vmul.f32 1.0, %v186
  %v188 = vrcp.pop %v178
  %v189 = vmul.f32 1.0, %v188
  %v190 = vrcp.pop %v179
  %v191 = vmul.f32 1.0, %v190
  %v192 = vrcp.pop %v180
  %v193 = vmul.f32 1.0, %v192
  %v194 = vrcp.pop %v181
  %v195 = vmul.f32 1.0, %v194
  %v196 = vrcp.pop %v182
  %v197 = vmul.f32 1.0, %v196
  %v198 = vrcp.pop %v183
  %v199 = vmul.f32 1.0, %v198
  %v200 = vmul.f32 %v22, %v185
  %v201 = vmul.f32 %v23, %v187
  %v202 = vmul.f32 %v24, %v189
  %v203 = vmul.f32 %v25, %v191
  %v204 = vmul.f32 %v26, %v193
  %v205 = vmul.f32 %v27, %v195
  %v206 = vmul.f32 %v28, %v197
  %v207 = vmul.f32 %v29, %v199
  %208 = vst [vmem:[%s3] sm:$0xff] %v200
  %209 = vst [vmem:[%s3 + $0x8] sm:$0xff] %v201
  %210 = vst [vmem:[%s3 + $0x10] sm:$0xff] %v202
  %211 = vst [vmem:[%s3 + $0x18] sm:$0xff] %v203
  %212 = vst [vmem:[%s3 + $0x20] sm:$0xff] %v204
  %213 = vst [vmem:[%s3 + $0x28] sm:$0xff] %v205
  %214 = vst [vmem:[%s3 + $0x30] sm:$0xff] %v206
  %215 = vst [vmem:[%s3 + $0x38] sm:$0xff] %v207
  %s216 = scalar_lea.vmem %s0, 64
  %v217 = vld [vmem:[%s216] sm:$0xff]
  %v218 = vld [vmem:[%s216 + $0x8] sm:$0xff]
  %v219 = vld [vmem:[%s216 + $0x10] sm:$0xff]
  %v220 = vld [vmem:[%s216 + $0x18] sm:$0xff]
  %v221 = vld [vmem:[%s216 + $0x20] sm:$0xff]
  %v222 = vld [vmem:[%s216 + $0x28] sm:$0xff]
  %v223 = vld [vmem:[%s216 + $0x30] sm:$0xff]
  %v224 = vld [vmem:[%s216 + $0x38] sm:$0xff]
  %225 = vmatprep.subr.mxu0 %v218
  %226 = vmatpush1.msra.mxu0 %v217
  %227 = vmatprep.subr.mxu0 %v220
  %228 = vmatpush1.msra.mxu0 %v219
  %229 = vmatprep.subr.mxu0 %v222
  %230 = vmatpush1.msra.mxu0 %v221
  %231 = vmatprep.subr.mxu0 %v224
  %232 = vmatpush1.msra.mxu0 %v223
  %233 = vmatprep.subr.mxu0 0.0
  %234 = vmatpush1.msra.mxu0 0.0
  %235 = vmatprep.subr.mxu0 0.0
  %236 = vmatpush1.msra.mxu0 0.0
  %237 = vmatprep.subr.mxu0 0.0
  %238 = vmatpush1.msra.mxu0 0.0
  %239 = vmatprep.subr.mxu0 0.0
  %240 = vmatpush1.msra.mxu0 0.0
  %241 = vmatprep.subr.mxu0 0.0
  %242 = vmatpush1.msra.mxu0 0.0
  %243 = vmatprep.subr.mxu0 0.0
  %244 = vmatpush1.msra.mxu0 0.0
  %245 = vmatprep.subr.mxu0 0.0
  %246 = vmatpush1.msra.mxu0 0.0
  %247 = vmatprep.subr.mxu0 0.0
  %248 = vmatpush1.msra.mxu0 0.0
  %249 = vmatprep.subr.mxu0 0.0
  %250 = vmatpush1.msra.mxu0 0.0
  %251 = vmatprep.subr.mxu0 0.0
  %252 = vmatpush1.msra.mxu0 0.0
  %253 = vmatprep.subr.mxu0 0.0
  %254 = vmatpush1.msra.mxu0 0.0
  %255 = vmatprep.subr.mxu0 0.0
  %256 = vmatpush1.msra.mxu0 0.0
  %257 = vmatprep.subr.mxu0 0.0
  %258 = vmatpush1.msra.mxu0 0.0
  %259 = vmatprep.subr.mxu0 0.0
  %260 = vmatpush1.msra.mxu0 0.0
  %261 = vmatprep.subr.mxu0 0.0
  %262 = vmatpush1.msra.mxu0 0.0
  %263 = vmatprep.subr.mxu0 0.0
  %264 = vmatpush1.msra.mxu0 0.0
  %265 = vmatprep.subr.mxu0 0.0
  %266 = vmatpush1.msra.mxu0 0.0
  %267 = vmatprep.subr.mxu0 0.0
  %268 = vmatpush1.msra.mxu0 0.0
  %269 = vmatprep.subr.mxu0 0.0
  %270 = vmatpush1.msra.mxu0 0.0
  %271 = vmatprep.subr.mxu0 0.0
  %272 = vmatpush1.msra.mxu0 0.0
  %273 = vmatprep.subr.mxu0 0.0
  %274 = vmatpush1.msra.mxu0 0.0
  %275 = vmatprep.subr.mxu0 0.0
  %276 = vmatpush1.msra.mxu0 0.0
  %277 = vmatprep.subr.mxu0 0.0
  %278 = vmatpush1.msra.mxu0 0.0
  %279 = vmatprep.subr.mxu0 0.0
  %280 = vmatpush1.msra.mxu0 0.0
  %281 = vmatprep.subr.mxu0 0.0
  %282 = vmatpush1.msra.mxu0 0.0
  %283 = vmatprep.subr.mxu0 0.0
  %284 = vmatpush1.msra.mxu0 0.0
  %285 = vmatprep.subr.mxu0 0.0
  %286 = vmatpush1.msra.mxu0 0.0
  %287 = vmatprep.subr.mxu0 0.0
  %288 = vmatpush1.msra.mxu0 0.0
  %289 = vmatprep.mubr.f32.mxu0 0.0
  %290 = vmatmul.mubr.f32.gmra.mrb[0].mxu0 %v52
  %v291 = vpop.f32.mrb[0].mxu0
  %v292 = vadd.f32 %v33, %v291
  %v293 = vpop.f32.mrb[0].mxu0
  %v294 = vadd.f32 %v33, %v293
  %295 = vmatprep.mubr.f32.mxu0 0.0
  %296 = vmatmul.mubr.f32.gmra.mrb[0].mxu0 %v55
  %v297 = vpop.f32.mrb[0].mxu0
  %v298 = vadd.f32 %v38, %v297
  %v299 = vpop.f32.mrb[0].mxu0
  %v300 = vadd.f32 %v38, %v299
  %301 = vmatprep.mubr.f32.mxu0 0.0
  %302 = vmatmul.mubr.f32.gmra.mrb[0].mxu0 %v58
  %v303 = vpop.f32.mrb[0].mxu0
  %v304 = vadd.f32 %v43, %v303
  %v305 = vpop.f32.mrb[0].mxu0
  %v306 = vadd.f32 %v43, %v305
  %307 = vmatprep.mubr.f32.mxu0 0.0
  %308 = vmatmul.mubr.f32.gmra.mrb[0].mxu0 %v61
  %v309 = vpop.f32.mrb[0].mxu0
  %v310 = vadd.f32 %v48, %v309
  %v311 = vpop.f32.mrb[0].mxu0
  %v312 = vadd.f32 %v48, %v311
  %313 = vdwg.mxu0
  %v314 = vxor.u32 %v292, 2147483648
  %v315 = vxor.u32 %v294, 2147483648
  %v316 = vxor.u32 %v298, 2147483648
  %v317 = vxor.u32 %v300, 2147483648
  %v318 = vxor.u32 %v304, 2147483648
  %v319 = vxor.u32 %v306, 2147483648
  %v320 = vxor.u32 %v310, 2147483648
  %v321 = vxor.u32 %v312, 2147483648
  %v322 = vmul.f32 %v314, 1.442695
  %v323 = vpow.pop %v322
  %v324 = vmul.f32 %v315, 1.442695
  %v325 = vpow.pop %v324
  %v326 = vmul.f32 %v316, 1.442695
  %v327 = vpow.pop %v326
  %v328 = vmul.f32 %v317, 1.442695
  %v329 = vpow.pop %v328
  %v330 = vmul.f32 %v318, 1.442695
  %v331 = vpow.pop %v330
  %v332 = vmul.f32 %v319, 1.442695
  %v333 = vpow.pop %v332
  %v334 = vmul.f32 %v320, 1.442695
  %v335 = vpow.pop %v334
  %v336 = vmul.f32 %v321, 1.442695
  %v337 = vpow.pop %v336
  %v338 = vadd.f32 %v323, 1.0
  %v339 = vadd.f32 %v325, 1.0
  %v340 = vadd.f32 %v327, 1.0
  %v341 = vadd.f32 %v329, 1.0
  %v342 = vadd.f32 %v331, 1.0
  %v343 = vadd.f32 %v333, 1.0
  %v344 = vadd.f32 %v335, 1.0
  %v345 = vadd.f32 %v337, 1.0
  %v346 = vrcp.pop %v338
  %v347 = vmul.f32 1.0, %v346
  %v348 = vrcp.pop %v339
  %v349 = vmul.f32 1.0, %v348
  %v350 = vrcp.pop %v340
  %v351 = vmul.f32 1.0, %v350
  %v352 = vrcp.pop %v341
  %v353 = vmul.f32 1.0, %v352
  %v354 = vrcp.pop %v342
  %v355 = vmul.f32 1.0, %v354
  %v356 = vrcp.pop %v343
  %v357 = vmul.f32 1.0, %v356
  %v358 = vrcp.pop %v344
  %v359 = vmul.f32 1.0, %v358
  %v360 = vrcp.pop %v345
  %v361 = vmul.f32 1.0, %v360
  %v362 = vmul.f32 %v217, %v347
  %v363 = vmul.f32 %v218, %v349
  %v364 = vmul.f32 %v219, %v351
  %v365 = vmul.f32 %v220, %v353
  %v366 = vmul.f32 %v221, %v355
  %v367 = vmul.f32 %v222, %v357
  %v368 = vmul.f32 %v223, %v359
  %v369 = vmul.f32 %v224, %v361
  %s370 = scalar_lea.vmem %s3, 64
  %371 = vst [vmem:[%s370] sm:$0xff] %v362
  %372 = vst [vmem:[%s370 + $0x8] sm:$0xff] %v363
  %373 = vst [vmem:[%s370 + $0x10] sm:$0xff] %v364
  %374 = vst [vmem:[%s370 + $0x18] sm:$0xff] %v365
  %375 = vst [vmem:[%s370 + $0x20] sm:$0xff] %v366
  %376 = vst [vmem:[%s370 + $0x28] sm:$0xff] %v367
  %377 = vst [vmem:[%s370 + $0x30] sm:$0xff] %v368
  %378 = vst [vmem:[%s370 + $0x38] sm:$0xff] %v369
  // Predicated region
  $region14: #{attention_module.1} parent=0 // pred_check
    _
  $region15: #{attention_module.1} parent=0 // pred_check_branch
    %380 = sbr.rel (0) target = $region17
  $region16: #{attention_module.1} parent=0 // pred_region
    _
  $region17: #{attention_module.1} parent=0 // pred_fallthru
    _
  // Predicated region
  $region18: #{attention_module.1} parent=0 // pred_check
    _
  $region19: #{attention_module.1} parent=0 // pred_check_branch
    %382 = sbr.rel (0) target = $region21
  $region20: #{attention_module.1} parent=0 // pred_region
    _
  $region21: #{attention_module.1} parent=0 // pred_fallthru
    _

</llo_original>
